<compile_context>
chip_gen: v7x
topology: tpu7x:2x2x1
jax: 0.10.0
libtpu: 0.0.40
codegen_flags: <defaults>
</compile_context>

<pallas_src>
import functools

import numpy as np
import jax
import jax.numpy as jnp
from jax import lax
from jax.experimental import pallas as pl
from jax.experimental.pallas import tpu as pltpu


def _round_up(n, m):
    return ((n + m - 1) // m) * m


# -----------------------------------------------------------------------------
# Path 1: tiny vocab -- one-hot MXU gather, table resident in VMEM.
# -----------------------------------------------------------------------------
def _onehot_gather_kernel(idx_ref, table_ref, out_ref):
    # idx_ref:   (TN, 1) int32 VMEM (pipelined per-tile indices)
    # table_ref: (V, D)  VMEM, resident (constant index_map -> loaded once)
    # out_ref:   (TN, D) VMEM output tile
    tn = out_ref.shape[0]
    v = table_ref.shape[0]
    ids = idx_ref[...]                                     # (TN, 1)
    iota = lax.broadcasted_iota(jnp.int32, (tn, v), 1)     # (TN, V)
    onehot = (ids == iota).astype(table_ref.dtype)         # (TN, V) exact 0/1
    out_ref[...] = jnp.dot(
        onehot, table_ref[...], preferred_element_type=jnp.float32
    ).astype(out_ref.dtype)


# -----------------------------------------------------------------------------
# Path 2: table fits VMEM -- resident table, per-row dynamic VMEM loads.
# -----------------------------------------------------------------------------
def _vmem_gather_kernel(idx_hbm, table_ref, out_ref, idx_smem, idx_sem, *, unroll):
    # idx_hbm:   (Np,)   int32 in HBM (pl.ANY) -- sliced per tile below
    # table_ref: (V, D)  VMEM, resident
    # out_ref:   (TN, D) VMEM output tile
    # idx_smem:  (TN,)   int32 SMEM scratch
    tn = out_ref.shape[0]
    base = pl.multiple_of(pl.program_id(0) * tn, tn)

    # Fetch this tile's indices HBM -> SMEM (tiny: 4*TN bytes).
    cp = pltpu.make_async_copy(idx_hbm.at[pl.ds(base, tn)], idx_smem, idx_sem.at[0])
    cp.start()
    cp.wait()

    def body(r, carry):
        row = idx_smem[r]
        out_ref[pl.ds(r, 1), :] = table_ref[pl.ds(row, 1), :]
        return carry

    lax.fori_loop(0, tn, body, 0, unroll=unroll)


# -----------------------------------------------------------------------------
# Path 3: large table stays in HBM -- per-row gather DMAs straight into the
# pipelined output block; single bulk wait.
# -----------------------------------------------------------------------------
def _hbm_gather_kernel(idx_hbm, table_hbm, out_ref, idx_smem, idx_sem, row_sem,
                       *, unroll):
    tn = out_ref.shape[0]
    base = pl.multiple_of(pl.program_id(0) * tn, tn)

    cp = pltpu.make_async_copy(idx_hbm.at[pl.ds(base, tn)], idx_smem, idx_sem.at[0])
    cp.start()
    cp.wait()

    def issue(r, carry):
        row = idx_smem[r]
        pltpu.make_async_copy(
            table_hbm.at[pl.ds(row, 1)], out_ref.at[pl.ds(r, 1)], row_sem.at[0]
        ).start()
        return carry

    lax.fori_loop(0, tn, issue, 0, unroll=unroll)

    # One bulk wait for all TN row copies: DMA semaphores count bytes, and the
    # TN (1, D) row transfers above sum to exactly one (TN, D) tile.
    pltpu.make_async_copy(out_ref, out_ref, row_sem.at[0]).wait()


# -----------------------------------------------------------------------------
# Wrapper / dispatch
# -----------------------------------------------------------------------------
def features_embedding(
    x,
    table,
    *,
    tile_rows=1024,
    path="auto",
    onehot_max_vocab=2048,
    vmem_table_budget=16 * 1024 * 1024,   # conservative across v5e/v6e/v7x
    unroll=8,
):
    """x: (B, F) int indices; table: (V, D) float -> (B, F, D) gathered rows."""
    B, F = x.shape
    V, D = table.shape
    N = B * F
    itemsize = jnp.dtype(table.dtype).itemsize

    # Flatten + clamp (defensive: an OOB index would be an OOB HBM DMA).
    idx = jnp.clip(x.reshape(N).astype(jnp.int32), 0, V - 1)

    table_bytes = V * D * itemsize
    if path == "auto":
        if table_bytes <= vmem_table_budget and V <= onehot_max_vocab:
            path = "onehot"
        elif table_bytes <= vmem_table_budget:
            path = "vmem"
        else:
            path = "hbm"

    # Row-tile size: large to amortise per-step overhead, multiple of 128 so
    # 1-D index slices stay lane-aligned and sublane constraints are met.
    TN = _round_up(min(tile_rows, _round_up(N, 128)), 128)
    if path == "onehot":
        # Bound the (TN, V) one-hot intermediate to ~1 MiB of f32.
        max_rows = max(128, (((1 << 20) // max(4 * V, 1)) // 128) * 128)
        TN = min(TN, max_rows)

    Np = _round_up(N, TN)
    if Np != N:
        idx = jnp.pad(idx, (0, Np - N))   # pad rows gather row 0; sliced off below
    grid = (Np // TN,)

    out_shape = jax.ShapeDtypeStruct((Np, D), table.dtype)
    out_spec = pl.BlockSpec((TN, D), lambda i: (i, 0))
    table_resident_spec = pl.BlockSpec((V, D), lambda i: (0, 0))   # loaded once

    cp_kwargs = dict(dimension_semantics=("parallel",))
    # Raise scoped VMEM only when a resident table + blocks needs it.
    vmem_need = 2 * table_bytes + 2 * TN * D * itemsize + 2 * TN * 4 + (4 << 20)
    if path in ("onehot", "vmem") and vmem_need > (32 << 20):
        cp_kwargs["vmem_limit_bytes"] = int(vmem_need)
    compiler_params = pltpu.CompilerParams(**cp_kwargs)

    if path == "onehot":
        out = pl.pallas_call(
            _onehot_gather_kernel,
            out_shape=out_shape,
            grid_spec=pltpu.PrefetchScalarGridSpec(
                num_scalar_prefetch=0,
                grid=grid,
                in_specs=[
                    pl.BlockSpec((TN, 1), lambda i: (i, 0)),   # indices (VMEM)
                    table_resident_spec,                       # table (VMEM, resident)
                ],
                out_specs=out_spec,
            ),
            compiler_params=compiler_params,
        )(idx.reshape(Np, 1), table)

    elif path == "vmem":
        out = pl.pallas_call(
            functools.partial(_vmem_gather_kernel, unroll=unroll),
            out_shape=out_shape,
            grid_spec=pltpu.PrefetchScalarGridSpec(
                num_scalar_prefetch=0,
                grid=grid,
                in_specs=[
                    pl.BlockSpec(memory_space=pl.ANY),         # indices stay in HBM
                    table_resident_spec,                       # table (VMEM, resident)
                ],
                out_specs=out_spec,
                scratch_shapes=[
                    pltpu.SMEM((TN,), jnp.int32),
                    pltpu.SemaphoreType.DMA((1,)),
                ],
            ),
            compiler_params=compiler_params,
        )(idx, table)

    elif path == "hbm":
        out = pl.pallas_call(
            functools.partial(_hbm_gather_kernel, unroll=unroll),
            out_shape=out_shape,
            grid_spec=pltpu.PrefetchScalarGridSpec(
                num_scalar_prefetch=0,
                grid=grid,
                in_specs=[
                    pl.BlockSpec(memory_space=pl.ANY),         # indices in HBM
                    pl.BlockSpec(memory_space=pl.ANY),         # table stays in HBM
                ],
                out_specs=out_spec,
                scratch_shapes=[
                    pltpu.SMEM((TN,), jnp.int32),
                    pltpu.SemaphoreType.DMA((1,)),             # index-slice fetch
                    pltpu.SemaphoreType.DMA((1,)),             # row gather DMAs
                ],
            ),
            compiler_params=compiler_params,
        )(idx, table)

    else:
        raise ValueError(f"unknown path: {path!r}")

    return out[:N].reshape(B, F, D)


if __name__ == "__main__":
    key = jax.random.PRNGKey(0)
    k_tab, k_idx = jax.random.split(key)

    field_dims = 64   # vocabulary size
    embed_dim = 32
    batch, num_fields = 8, 4

    # torch.nn.init.xavier_uniform_: U(-a, a), a = sqrt(6 / (fan_in + fan_out))
    limit = float(np.sqrt(6.0 / (field_dims + embed_dim)))
    table = jax.random.uniform(
        k_tab, (field_dims, embed_dim), dtype=jnp.float32,
        minval=-limit, maxval=limit,
    )
    x = jax.random.randint(k_idx, (batch, num_fields), 0, field_dims, dtype=jnp.int32)

    # Auto dispatch picks the resident-table one-hot fast path at this size.
    out = features_embedding(x, table)
    out = jax.block_until_ready(out)

    ref = jnp.take(table, x, axis=0)   # (B, F, D) reference
    assert out.shape == (batch, num_fields, embed_dim)
    np.testing.assert_allclose(np.asarray(out), np.asarray(ref), rtol=1e-6, atol=1e-6)

    print("KERNEL_OK")
</pallas_src>

<mosaic_0001>
module attributes {stable_mosaic.version = 11 : i64} {
  func.func @_onehot_gather_kernel(%arg0: i32, %arg1: memref<128x1xi32, #tpu.memory_space<vmem>>, %arg2: memref<64x32xf32, #tpu.memory_space<vmem>>, %arg3: memref<128x32xf32, #tpu.memory_space<vmem>>) attributes {dimension_semantics = [#tpu.dimension_semantics<parallel>], iteration_bounds = array<i64: 1>, scalar_prefetch = 0 : i64, scratch_operands = 0 : i64, tpu.core_type = #tpu.core_type<tc>, window_params = [{transform_indices = @transform_0, window_bounds = array<i64: 128, 1>}, {pipeline_mode = #tpu.pipeline_mode<synchronous>, transform_indices = @transform_1, window_bounds = array<i64: 64, 32>}, {transform_indices = @transform_2, window_bounds = array<i64: 128, 32>}]} {
    %c0 = arith.constant 0 : index
    %c0_0 = arith.constant 0 : index
    %0 = vector.load %arg1[%c0, %c0_0] : memref<128x1xi32, #tpu.memory_space<vmem>>, vector<128x1xi32>
    %1 = tpu.iota {dimensions = array<i32: 1>} : vector<128x64xi32>
    %2 = vector.broadcast %0 : vector<128x1xi32> to vector<128x64xi32>
    %3 = arith.cmpi eq, %2, %1 : vector<128x64xi32>
    %4 = arith.extui %3 : vector<128x64xi1> to vector<128x64xi32>
    %5 = arith.sitofp %4 : vector<128x64xi32> to vector<128x64xf32>
    %c0_1 = arith.constant 0 : index
    %c0_2 = arith.constant 0 : index
    %6 = vector.load %arg2[%c0_1, %c0_2] : memref<64x32xf32, #tpu.memory_space<vmem>>, vector<64x32xf32>
    %cst = arith.constant dense<0.000000e+00> : vector<128x32xf32>
    %7 = tpu.matmul %5, %6, %cst {dimension_numbers = #tpu.dot_dimension_numbers<[1], [0], [0], [1], [0, 0, 1, 1], [], []>} : vector<128x64xf32>, vector<64x32xf32>, vector<128x32xf32> -> vector<128x32xf32>
    %c0_3 = arith.constant 0 : index
    %c0_4 = arith.constant 0 : index
    %8 = vector.load %arg3[%c0_3, %c0_4] : memref<128x32xf32, #tpu.memory_space<vmem>>, vector<128x32xf32>
    tpu.vector_store %arg3[%c0_3, %c0_4], %7 {strides = array<i32>} : memref<128x32xf32, #tpu.memory_space<vmem>>, vector<128x32xf32>,
    return
  }
  func.func @transform_0(%arg0: i32) -> (i32, i32) {
    %c0_i32 = arith.constant 0 : i32
    %c0_i32_0 = arith.constant 0 : i32
    return %arg0, %c0_i32 : i32, i32
  }
  func.func @transform_1(%arg0: i32) -> (i32, i32) {
    %c0_i32 = arith.constant 0 : i32
    %c0_i32_0 = arith.constant 0 : i32
    %c0_i32_1 = arith.constant 0 : i32
    return %c0_i32, %c0_i32_0 : i32, i32
  }
  func.func @transform_2(%arg0: i32) -> (i32, i32) {
    %c0_i32 = arith.constant 0 : i32
    %c0_i32_0 = arith.constant 0 : i32
    return %arg0, %c0_i32 : i32, i32
  }
}

</mosaic_0001>

<llo_original>
// kernel: tpu_custom_call.1
$region0: #{tpu_custom_call.1}
  #allocation0 [shape = 'u32[]', space=smem, size = 0x4, offset = 0x4, fixed_abs, tag = 'smem constant byte address 0x4 - core index']
  #allocation1 [shape = 'u32[144,128]{1,0:T(1,128)}', space=vmem, size = 0x12000, scoped, tag = 'internal scratch']
  %s0 = inlined_call_operand.vmem [shape: s32[128,1], index: 0, kind: input, shape index: {}]
  %s1 = inlined_call_operand.vmem [shape: f32[64,32], index: 1, kind: input, shape index: {}]
  %s2 = inlined_call_operand.vmem [shape: f32[128,32], index: 2, kind: output, shape index: {}]
  %s3 = sld [smem:[#allocation0]]
  $region18: #{tpu_custom_call.1} parent=0
    _
  %s5 = ssub.s32 1, %s3
  %s6 = scalar_select 0, %s5, %s3
  // Predicated region
  $region2: #{tpu_custom_call.1} parent=0 // pred_check
    _
  $region3: #{tpu_custom_call.1} parent=0 // pred_check_branch
    %8 = sbr.rel (0) target = $region5
  $region4: #{tpu_custom_call.1} parent=0 // pred_region
    _
  $region5: #{tpu_custom_call.1} parent=0 // pred_fallthru
    _
  // Predicated region
  $region6: #{tpu_custom_call.1} parent=0 // pred_check
    _
  $region7: #{tpu_custom_call.1} parent=0 // pred_check_branch
    %10 = sbr.rel (0) target = $region9
  $region8: #{tpu_custom_call.1} parent=0 // pred_region
    _
  $region9: #{tpu_custom_call.1} parent=0 // pred_fallthru
    _
  %v11 = vld [vmem:[%s0] sm:$0xff]
  %v12 = vld [vmem:[%s0 + $0x8] sm:$0xff]
  %v13 = vld [vmem:[%s0 + $0x10] sm:$0xff]
  %v14 = vld [vmem:[%s0 + $0x18] sm:$0xff]
  %v15 = vld [vmem:[%s0 + $0x20] sm:$0xff]
  %v16 = vld [vmem:[%s0 + $0x28] sm:$0xff]
  %v17 = vld [vmem:[%s0 + $0x30] sm:$0xff]
  %v18 = vld [vmem:[%s0 + $0x38] sm:$0xff]
  %v19 = vld [vmem:[%s0 + $0x40] sm:$0xff]
  %v20 = vld [vmem:[%s0 + $0x48] sm:$0xff]
  %v21 = vld [vmem:[%s0 + $0x50] sm:$0xff]
  %v22 = vld [vmem:[%s0 + $0x58] sm:$0xff]
  %v23 = vld [vmem:[%s0 + $0x60] sm:$0xff]
  %v24 = vld [vmem:[%s0 + $0x68] sm:$0xff]
  %v25 = vld [vmem:[%s0 + $0x70] sm:$0xff]
  %v26 = vld [vmem:[%s0 + $0x78] sm:$0xff]
  %v27 = vlaneseq
  %v28 = vand.u32 %v27, 127
  %29 = vset.pattern.permute.xlu0 0
  %30 = vperm.xlu0 %29, %v11
  %v31 = vpop.permute.xlu0 %30
  %32 = vset.pattern.permute.xlu0 0
  %33 = vperm.xlu0 %32, %v12
  %v34 = vpop.permute.xlu0 %33
  %35 = vset.pattern.permute.xlu0 0
  %36 = vperm.xlu0 %35, %v13
  %v37 = vpop.permute.xlu0 %36
  %38 = vset.pattern.permute.xlu0 0
  %39 = vperm.xlu0 %38, %v14
  %v40 = vpop.permute.xlu0 %39
  %41 = vset.pattern.permute.xlu0 0
  %42 = vperm.xlu0 %41, %v15
  %v43 = vpop.permute.xlu0 %42
  %44 = vset.pattern.permute.xlu0 0
  %45 = vperm.xlu0 %44, %v16
  %v46 = vpop.permute.xlu0 %45
  %47 = vset.pattern.permute.xlu0 0
  %48 = vperm.xlu0 %47, %v17
  %v49 = vpop.permute.xlu0 %48
  %50 = vset.pattern.permute.xlu0 0
  %51 = vperm.xlu0 %50, %v18
  %v52 = vpop.permute.xlu0 %51
  %53 = vset.pattern.permute.xlu0 0
  %54 = vperm.xlu0 %53, %v19
  %v55 = vpop.permute.xlu0 %54
  %56 = vset.pattern.permute.xlu0 0
  %57 = vperm.xlu0 %56, %v20
  %v58 = vpop.permute.xlu0 %57
  %59 = vset.pattern.permute.xlu0 0
  %60 = vperm.xlu0 %59, %v21
  %v61 = vpop.permute.xlu0 %60
  %62 = vset.pattern.permute.xlu0 0
  %63 = vperm.xlu0 %62, %v22
  %v64 = vpop.permute.xlu0 %63
  %65 = vset.pattern.permute.xlu0 0
  %66 = vperm.xlu0 %65, %v23
  %v67 = vpop.permute.xlu0 %66
  %68 = vset.pattern.permute.xlu0 0
  %69 = vperm.xlu0 %68, %v24
  %v70 = vpop.permute.xlu0 %69
  %71 = vset.pattern.permute.xlu0 0
  %72 = vperm.xlu0 %71, %v25
  %v73 = vpop.permute.xlu0 %72
  %74 = vset.pattern.permute.xlu0 0
  %75 = vperm.xlu0 %74, %v26
  %v76 = vpop.permute.xlu0 %75
  %vm77 = vcmp.eq.s32.totalorder %v31, %v28
  %vm78 = vcmp.eq.s32.totalorder %v34, %v28
  %vm79 = vcmp.eq.s32.totalorder %v37, %v28
  %vm80 = vcmp.eq.s32.totalorder %v40, %v28
  %vm81 = vcmp.eq.s32.totalorder %v43, %v28
  %vm82 = vcmp.eq.s32.totalorder %v46, %v28
  %vm83 = vcmp.eq.s32.totalorder %v49, %v28
  %vm84 = vcmp.eq.s32.totalorder %v52, %v28
  %vm85 = vcmp.eq.s32.totalorder %v55, %v28
  %vm86 = vcmp.eq.s32.totalorder %v58, %v28
  %vm87 = vcmp.eq.s32.totalorder %v61, %v28
  %vm88 = vcmp.eq.s32.totalorder %v64, %v28
  %vm89 = vcmp.eq.s32.totalorder %v67, %v28
  %vm90 = vcmp.eq.s32.totalorder %v70, %v28
  %vm91 = vcmp.eq.s32.totalorder %v73, %v28
  %vm92 = vcmp.eq.s32.totalorder %v76, %v28
  %v93 = vsel %vm77, 1, 0
  %v94 = vsel %vm78, 1, 0
  %v95 = vsel %vm79, 1, 0
  %v96 = vsel %vm80, 1, 0
  %v97 = vsel %vm81, 1, 0
  %v98 = vsel %vm82, 1, 0
  %v99 = vsel %vm83, 1, 0
  %v100 = vsel %vm84, 1, 0
  %v101 = vsel %vm85, 1, 0
  %v102 = vsel %vm86, 1, 0
  %v103 = vsel %vm87, 1, 0
  %v104 = vsel %vm88, 1, 0
  %v105 = vsel %vm89, 1, 0
  %v106 = vsel %vm90, 1, 0
  %v107 = vsel %vm91, 1, 0
  %v108 = vsel %vm92, 1, 0
  %v109 = vcvt.s32.f32 %v93
  %v110 = vcvt.s32.f32 %v94
  %v111 = vcvt.s32.f32 %v95
  %v112 = vcvt.s32.f32 %v96
  %v113 = vcvt.s32.f32 %v97
  %v114 = vcvt.s32.f32 %v98
  %v115 = vcvt.s32.f32 %v99
  %v116 = vcvt.s32.f32 %v100
  %v117 = vcvt.s32.f32 %v101
  %v118 = vcvt.s32.f32 %v102
  %v119 = vcvt.s32.f32 %v103
  %v120 = vcvt.s32.f32 %v104
  %v121 = vcvt.s32.f32 %v105
  %v122 = vcvt.s32.f32 %v106
  %v123 = vcvt.s32.f32 %v107
  %v124 = vcvt.s32.f32 %v108
  %v125 = vld [vmem:[%s1] sm:$0xff]
  %v126 = vld [vmem:[%s1 + $0x8] sm:$0xff]
  %v127 = vld [vmem:[%s1 + $0x10] sm:$0xff]
  %v128 = vld [vmem:[%s1 + $0x18] sm:$0xff]
  %v129 = vld [vmem:[%s1 + $0x20] sm:$0xff]
  %v130 = vld [vmem:[%s1 + $0x28] sm:$0xff]
  %v131 = vld [vmem:[%s1 + $0x30] sm:$0xff]
  %v132 = vld [vmem:[%s1 + $0x38] sm:$0xff]
  %vm133 = vcmask 523264
  %v135 = vsel %vm133, %v109, 0
  %v138 = vsel %vm133, %v110, 0
  %v141 = vsel %vm133, %v111, 0
  %v144 = vsel %vm133, %v112, 0
  %v147 = vsel %vm133, %v113, 0
  %v150 = vsel %vm133, %v114, 0
  %v153 = vsel %vm133, %v115, 0
  %v156 = vsel %vm133, %v116, 0
  %v159 = vsel %vm133, %v117, 0
  %v162 = vsel %vm133, %v118, 0
  %v165 = vsel %vm133, %v119, 0
  %v168 = vsel %vm133, %v120, 0
  %v171 = vsel %vm133, %v121, 0
  %v174 = vsel %vm133, %v122, 0
  %v177 = vsel %vm133, %v123, 0
  %v180 = vsel %vm133, %v124, 0
  %182 = vmatprep.subr.mxu0 0.0
  %183 = vmatpush1.msra.mxu0 %v125
  %184 = vmatprep.subr.mxu0 0.0
  %185 = vmatpush1.msra.mxu0 %v126
  %186 = vmatprep.subr.mxu0 0.0
  %187 = vmatpush1.msra.mxu0 %v127
  %188 = vmatprep.subr.mxu0 0.0
  %189 = vmatpush1.msra.mxu0 %v128
  %190 = vmatprep.subr.mxu0 0.0
  %191 = vmatpush1.msra.mxu0 %v129
  %192 = vmatprep.subr.mxu0 0.0
  %193 = vmatpush1.msra.mxu0 %v130
  %194 = vmatprep.subr.mxu0 0.0
  %195 = vmatpush1.msra.mxu0 %v131
  %196 = vmatprep.subr.mxu0 0.0
  %197 = vmatpush1.msra.mxu0 %v132
  %198 = vmatprep.subr.mxu0 0.0
  %199 = vmatpush1.msra.mxu0 0.0
  %200 = vmatprep.subr.mxu0 0.0
  %201 = vmatpush1.msra.mxu0 0.0
  %202 = vmatprep.subr.mxu0 0.0
  %203 = vmatpush1.msra.mxu0 0.0
  %204 = vmatprep.subr.mxu0 0.0
  %205 = vmatpush1.msra.mxu0 0.0
  %206 = vmatprep.subr.mxu0 0.0
  %207 = vmatpush1.msra.mxu0 0.0
  %208 = vmatprep.subr.mxu0 0.0
  %209 = vmatpush1.msra.mxu0 0.0
  %210 = vmatprep.subr.mxu0 0.0
  %211 = vmatpush1.msra.mxu0 0.0
  %212 = vmatprep.subr.mxu0 0.0
  %213 = vmatpush1.msra.mxu0 0.0
  %214 = vmatprep.subr.mxu0 0.0
  %215 = vmatpush1.msra.mxu0 0.0
  %216 = vmatprep.subr.mxu0 0.0
  %217 = vmatpush1.msra.mxu0 0.0
  %218 = vmatprep.subr.mxu0 0.0
  %219 = vmatpush1.msra.mxu0 0.0
  %220 = vmatprep.subr.mxu0 0.0
  %221 = vmatpush1.msra.mxu0 0.0
  %222 = vmatprep.subr.mxu0 0.0
  %223 = vmatpush1.msra.mxu0 0.0
  %224 = vmatprep.subr.mxu0 0.0
  %225 = vmatpush1.msra.mxu0 0.0
  %226 = vmatprep.subr.mxu0 0.0
  %227 = vmatpush1.msra.mxu0 0.0
  %228 = vmatprep.subr.mxu0 0.0
  %229 = vmatpush1.msra.mxu0 0.0
  %230 = vmatprep.subr.mxu0 0.0
  %231 = vmatpush1.msra.mxu0 0.0
  %232 = vmatprep.subr.mxu0 0.0
  %233 = vmatpush1.msra.mxu0 0.0
  %234 = vmatprep.subr.mxu0 0.0
  %235 = vmatpush1.msra.mxu0 0.0
  %236 = vmatprep.subr.mxu0 0.0
  %237 = vmatpush1.msra.mxu0 0.0
  %238 = vmatprep.subr.mxu0 0.0
  %239 = vmatpush1.msra.mxu0 0.0
  %240 = vmatprep.subr.mxu0 0.0
  %241 = vmatpush1.msra.mxu0 0.0
  %242 = vmatprep.subr.mxu0 0.0
  %243 = vmatpush1.msra.mxu0 0.0
  %244 = vmatprep.subr.mxu0 0.0
  %245 = vmatpush1.msra.mxu0 0.0
  %246 = vmatprep.mubr.f32.mxu0 0.0
  %247 = vmatmul.mubr.f32.gmra.mrb[0].mxu0 %v135
  %v248 = vpop.f32.mrb[0].mxu0
  %v249 = vadd.f32 0.0, %v248
  %v250 = vpop.f32.mrb[0].mxu0
  %251 = vmatprep.mubr.f32.mxu0 0.0
  %252 = vmatmul.mubr.f32.gmra.mrb[0].mxu0 %v138
  %v253 = vpop.f32.mrb[0].mxu0
  %v254 = vadd.f32 0.0, %v253
  %v255 = vpop.f32.mrb[0].mxu0
  %256 = vmatprep.mubr.f32.mxu0 0.0
  %257 = vmatmul.mubr.f32.gmra.mrb[0].mxu0 %v141
  %v258 = vpop.f32.mrb[0].mxu0
  %v259 = vadd.f32 0.0, %v258
  %v260 = vpop.f32.mrb[0].mxu0
  %261 = vmatprep.mubr.f32.mxu0 0.0
  %262 = vmatmul.mubr.f32.gmra.mrb[0].mxu0 %v144
  %v263 = vpop.f32.mrb[0].mxu0
  %v264 = vadd.f32 0.0, %v263
  %v265 = vpop.f32.mrb[0].mxu0
  %266 = vmatprep.mubr.f32.mxu0 0.0
  %267 = vmatmul.mubr.f32.gmra.mrb[0].mxu0 %v147
  %v268 = vpop.f32.mrb[0].mxu0
  %v269 = vadd.f32 0.0, %v268
  %v270 = vpop.f32.mrb[0].mxu0
  %271 = vmatprep.mubr.f32.mxu0 0.0
  %272 = vmatmul.mubr.f32.gmra.mrb[0].mxu0 %v150
  %v273 = vpop.f32.mrb[0].mxu0
  %v274 = vadd.f32 0.0, %v273
  %v275 = vpop.f32.mrb[0].mxu0
  %276 = vmatprep.mubr.f32.mxu0 0.0
  %277 = vmatmul.mubr.f32.gmra.mrb[0].mxu0 %v153
  %v278 = vpop.f32.mrb[0].mxu0
  %v279 = vadd.f32 0.0, %v278
  %v280 = vpop.f32.mrb[0].mxu0
  %281 = vmatprep.mubr.f32.mxu0 0.0
  %282 = vmatmul.mubr.f32.gmra.mrb[0].mxu0 %v156
  %v283 = vpop.f32.mrb[0].mxu0
  %v284 = vadd.f32 0.0, %v283
  %v285 = vpop.f32.mrb[0].mxu0
  %286 = vmatprep.mubr.f32.mxu0 0.0
  %287 = vmatmul.mubr.f32.gmra.mrb[0].mxu0 %v159
  %v288 = vpop.f32.mrb[0].mxu0
  %v289 = vadd.f32 0.0, %v288
  %v290 = vpop.f32.mrb[0].mxu0
  %291 = vmatprep.mubr.f32.mxu0 0.0
  %292 = vmatmul.mubr.f32.gmra.mrb[0].mxu0 %v162
  %v293 = vpop.f32.mrb[0].mxu0
  %v294 = vadd.f32 0.0, %v293
  %v295 = vpop.f32.mrb[0].mxu0
  %296 = vmatprep.mubr.f32.mxu0 0.0
  %297 = vmatmul.mubr.f32.gmra.mrb[0].mxu0 %v165
  %v298 = vpop.f32.mrb[0].mxu0
  %v299 = vadd.f32 0.0, %v298
  %v300 = vpop.f32.mrb[0].mxu0
  %301 = vmatprep.mubr.f32.mxu0 0.0
  %302 = vmatmul.mubr.f32.gmra.mrb[0].mxu0 %v168
  %v303 = vpop.f32.mrb[0].mxu0
  %v304 = vadd.f32 0.0, %v303
  %v305 = vpop.f32.mrb[0].mxu0
  %306 = vmatprep.mubr.f32.mxu0 0.0
  %307 = vmatmul.mubr.f32.gmra.mrb[0].mxu0 %v171
  %v308 = vpop.f32.mrb[0].mxu0
  %v309 = vadd.f32 0.0, %v308
  %v310 = vpop.f32.mrb[0].mxu0
  %311 = vmatprep.mubr.f32.mxu0 0.0
  %312 = vmatmul.mubr.f32.gmra.mrb[0].mxu0 %v174
  %v313 = vpop.f32.mrb[0].mxu0
  %v314 = vadd.f32 0.0, %v313
  %v315 = vpop.f32.mrb[0].mxu0
  %316 = vmatprep.mubr.f32.mxu0 0.0
  %317 = vmatmul.mubr.f32.gmra.mrb[0].mxu0 %v177
  %v318 = vpop.f32.mrb[0].mxu0
  %v319 = vadd.f32 0.0, %v318
  %v320 = vpop.f32.mrb[0].mxu0
  %321 = vmatprep.mubr.f32.mxu0 0.0
  %322 = vmatmul.mubr.f32.gmra.mrb[0].mxu0 %v180
  %v323 = vpop.f32.mrb[0].mxu0
  %v324 = vadd.f32 0.0, %v323
  %v325 = vpop.f32.mrb[0].mxu0
  %326 = vdwg.mxu0
  %vm327 = vcmask 261120
  %328 = vst.msk [vmem:[%s2] sm:$0xff] %vm327, %v249
  %329 = vst.msk [vmem:[%s2 + $0x8] sm:$0xff] %vm327, %v254
  %330 = vst.msk [vmem:[%s2 + $0x10] sm:$0xff] %vm327, %v259
  %331 = vst.msk [vmem:[%s2 + $0x18] sm:$0xff] %vm327, %v264
  %332 = vst.msk [vmem:[%s2 + $0x20] sm:$0xff] %vm327, %v269
  %333 = vst.msk [vmem:[%s2 + $0x28] sm:$0xff] %vm327, %v274
  %334 = vst.msk [vmem:[%s2 + $0x30] sm:$0xff] %vm327, %v279
  %335 = vst.msk [vmem:[%s2 + $0x38] sm:$0xff] %vm327, %v284
  %336 = vst.msk [vmem:[%s2 + $0x40] sm:$0xff] %vm327, %v289
  %337 = vst.msk [vmem:[%s2 + $0x48] sm:$0xff] %vm327, %v294
  %338 = vst.msk [vmem:[%s2 + $0x50] sm:$0xff] %vm327, %v299
  %339 = vst.msk [vmem:[%s2 + $0x58] sm:$0xff] %vm327, %v304
  %340 = vst.msk [vmem:[%s2 + $0x60] sm:$0xff] %vm327, %v309
  %341 = vst.msk [vmem:[%s2 + $0x68] sm:$0xff] %vm327, %v314
  %342 = vst.msk [vmem:[%s2 + $0x70] sm:$0xff] %vm327, %v319
  %343 = vst.msk [vmem:[%s2 + $0x78] sm:$0xff] %vm327, %v324
  // Predicated region
  $region10: #{tpu_custom_call.1} parent=0 // pred_check
    _
  $region11: #{tpu_custom_call.1} parent=0 // pred_check_branch
    %345 = sbr.rel (0) target = $region13
  $region12: #{tpu_custom_call.1} parent=0 // pred_region
    _
  $region13: #{tpu_custom_call.1} parent=0 // pred_fallthru
    _
  // Predicated region
  $region14: #{tpu_custom_call.1} parent=0 // pred_check
    _
  $region15: #{tpu_custom_call.1} parent=0 // pred_check_branch
    %347 = sbr.rel (0) target = $region17
  $region16: #{tpu_custom_call.1} parent=0 // pred_region
    _
  $region17: #{tpu_custom_call.1} parent=0 // pred_fallthru
    _

</llo_original>
